<compile_context>
chip_gen: v5e
topology: v5e:2x2
jax: 0.10.0
libtpu: 0.0.40
codegen_flags: <defaults>
</compile_context>

<pallas_src>
import functools

import jax
import jax.numpy as jnp
from jax.experimental import pallas as pl
from jax.experimental.pallas import tpu as pltpu


def _make_critic_kernel(n_hidden):
    """Build a kernel for `n_hidden` tanh layers + linear scalar head.

    Ref order: obs_t (ob_dim, TB); then per hidden layer W^T (out, in) and
    bias column (out, 1); then head weight column (size, 1) in VMEM; head
    bias (1,) in SMEM; finally the (1, TB) output block.
    """

    def kernel(*refs):
        obs_ref = refs[0]
        out_ref = refs[-1]
        bo_ref = refs[-2]            # (1,)  scalar head bias, SMEM
        wo_ref = refs[-3]            # (size, 1) head weight column, VMEM
        layer_refs = refs[1:-3]      # [W0^T, b0, W1^T, b1, ...]

        h = obs_ref[...]             # (ob_dim, TB), lane-dense batch axis
        for l in range(n_hidden):
            w_ref = layer_refs[2 * l]
            b_ref = layer_refs[2 * l + 1]
            h = jnp.tanh(
                jnp.dot(w_ref[...], h, preferred_element_type=jnp.float32)
                + b_ref[...])        # (size, TB)

        # Head: VPU multiply + XLU sublane reduction (avoids an M=1 MXU
        # matmul); result is a lane-dense (1, TB) row.
        v = jnp.sum(h * wo_ref[...], axis=0, keepdims=True) + bo_ref[0]
        out_ref[...] = v.astype(out_ref.dtype)

    return kernel


@functools.partial(jax.jit, static_argnames=("tile_b",))
def critic_forward(obs, params, *, tile_b=1024):
    """Pallas implementation of BootstrappedContinuousCritic.forward.

    obs:    (N, ob_dim) float32.
    params: (hidden, (wo, bo)) where hidden = [(w, b), ...] with
            w: (in, out), b: (out,); wo: (size, 1); bo: (1,).
    Returns (N,) float32  (== critic_network(obs).squeeze(1)).
    """
    hidden, (wo, bo) = params
    n, ob_dim = obs.shape
    n_hidden = len(hidden)
    size = hidden[0][0].shape[1]

    # Batch tile: big, lane-aligned (multiple of 128), but keep >= 2 grid
    # steps when the batch allows it (v7x has two TensorCores).
    tile_b = int(tile_b)
    tile_b = max(128, min(4096, (tile_b // 128) * 128))
    if n > 128:
        half = ((n + 1) // 2 + 127) // 128 * 128
        tile_b = min(tile_b, half)
    grid_n = -(-n // tile_b)          # cdiv; ragged tail handled by padding
    n_pad = grid_n * tile_b

    # Transposed (feature, batch) layout; pad the batch axis with zeros.
    obs_t = jnp.pad(obs.T.astype(jnp.float32), ((0, 0), (0, n_pad - n)))

    flat_params = []
    in_specs = [pl.BlockSpec((ob_dim, tile_b), lambda i: (0, i))]
    for (w, b) in hidden:
        w_t = w.T.astype(jnp.float32)                  # (out, in)
        b_c = b.reshape(-1, 1).astype(jnp.float32)     # (out, 1)
        flat_params += [w_t, b_c]
        # Constant index_maps: weights stay resident in VMEM across the grid.
        in_specs += [pl.BlockSpec(w_t.shape, lambda i: (0, 0)),
                     pl.BlockSpec(b_c.shape, lambda i: (0, 0))]
    wo_c = wo.reshape(-1, 1).astype(jnp.float32)        # (size, 1)
    bo_s = bo.reshape(1).astype(jnp.float32)            # (1,) scalar in SMEM
    flat_params += [wo_c, bo_s]
    in_specs += [pl.BlockSpec(wo_c.shape, lambda i: (0, 0)),
                 pl.BlockSpec(memory_space=pltpu.MemorySpace.SMEM)]

    # Advisory cost hint so XLA can overlap this tiny custom call.
    flops = 2 * n_pad * (ob_dim * size + (n_hidden - 1) * size * size + size)
    transcendentals = n_pad * size * n_hidden
    param_bytes = sum(int(p.size) * 4 for p in flat_params)
    bytes_accessed = n_pad * (ob_dim + 1) * 4 + param_bytes

    out = pl.pallas_call(
        _make_critic_kernel(n_hidden),
        out_shape=jax.ShapeDtypeStruct((1, n_pad), jnp.float32),
        grid_spec=pltpu.PrefetchScalarGridSpec(
            num_scalar_prefetch=0,
            grid=(grid_n,),
            in_specs=in_specs,
            # Single lane-dense row; block dims either equal the full array
            # dim (sublane=1) or are a multiple of 128 (lane=tile_b).
            out_specs=pl.BlockSpec((1, tile_b), lambda i: (0, i)),
        ),
        compiler_params=pltpu.CompilerParams(
            dimension_semantics=("parallel",)),
        cost_estimate=pl.CostEstimate(
            flops=int(flops),
            transcendentals=int(transcendentals),
            bytes_accessed=int(bytes_accessed)),
    )(obs_t, *flat_params)

    # Glue: lane-dense (1, N_pad) slab -> (N,), i.e. the .squeeze(1).
    return out.reshape(-1)[:n]


def init_params(key, ob_dim, size, n_layers):
    """Deterministic synthetic init of the MLP parameters."""
    keys = jax.random.split(key, 2 * n_layers + 2)
    scale = 0.1
    hidden = []
    in_dim = ob_dim
    for l in range(n_layers):
        w = scale * jax.random.normal(keys[2 * l], (in_dim, size), jnp.float32)
        b = 0.05 * jax.random.normal(keys[2 * l + 1], (size,), jnp.float32)
        hidden.append((w, b))
        in_dim = size
    wo = scale * jax.random.normal(keys[-2], (size, 1), jnp.float32)
    bo = 0.05 * jax.random.normal(keys[-1], (1,), jnp.float32)
    return hidden, (wo, bo)


if __name__ == "__main__":
    # hparams consistent with the module: ob_dim=4, n_layers=2, size=32.
    # batch=300 deliberately NOT a multiple of the tile (exercises ragged pad).
    ob_dim, size, n_layers, batch = 4, 32, 2, 300

    key = jax.random.PRNGKey(0)
    pkey, okey = jax.random.split(key)
    params = init_params(pkey, ob_dim, size, n_layers)
    obs = jax.random.normal(okey, (batch, ob_dim), jnp.float32)

    values_n = critic_forward(obs, params, tile_b=128)
    values_n = jax.block_until_ready(values_n)

    # pure-JAX reference of the same MLP: critic_network(obs).squeeze(1)
    hidden, (wo, bo) = params
    ref = obs
    for (w, b) in hidden:
        ref = jnp.tanh(ref @ w + b)
    ref = (ref @ wo + bo)[:, 0]

    assert values_n.shape == (batch,)
    assert jnp.allclose(values_n, ref, atol=1e-5, rtol=1e-5), "mismatch vs reference"
    print("KERNEL_OK")
</pallas_src>

<mosaic_0001>
module attributes {stable_mosaic.version = 11 : i64} {
  func.func @kernel(%arg0: i32, %arg1: memref<4x128xf32, #tpu.memory_space<vmem>>, %arg2: memref<32x4xf32, #tpu.memory_space<vmem>>, %arg3: memref<32x1xf32, #tpu.memory_space<vmem>>, %arg4: memref<32x32xf32, #tpu.memory_space<vmem>>, %arg5: memref<32x1xf32, #tpu.memory_space<vmem>>, %arg6: memref<32x1xf32, #tpu.memory_space<vmem>>, %arg7: memref<1xf32, #tpu.memory_space<smem>>, %arg8: memref<1x128xf32, #tpu.memory_space<vmem>>) attributes {dimension_semantics = [#tpu.dimension_semantics<parallel>], iteration_bounds = array<i64: 3>, scalar_prefetch = 0 : i64, scratch_operands = 0 : i64, tpu.core_type = #tpu.core_type<tc>, window_params = [{transform_indices = @transform_0, window_bounds = array<i64: 4, 128>}, {pipeline_mode = #tpu.pipeline_mode<synchronous>, transform_indices = @transform_1, window_bounds = array<i64: 32, 4>}, {pipeline_mode = #tpu.pipeline_mode<synchronous>, transform_indices = @transform_2, window_bounds = array<i64: 32, 1>}, {pipeline_mode = #tpu.pipeline_mode<synchronous>, transform_indices = @transform_3, window_bounds = array<i64: 32, 32>}, {pipeline_mode = #tpu.pipeline_mode<synchronous>, transform_indices = @transform_4, window_bounds = array<i64: 32, 1>}, {pipeline_mode = #tpu.pipeline_mode<synchronous>, transform_indices = @transform_5, window_bounds = array<i64: 32, 1>}, {transform_indices = @transform_6, window_bounds = array<i64: 1>}, {transform_indices = @transform_7, window_bounds = array<i64: 1, 128>}]} {
    %c0 = arith.constant 0 : index
    %c0_0 = arith.constant 0 : index
    %0 = vector.load %arg1[%c0, %c0_0] : memref<4x128xf32, #tpu.memory_space<vmem>>, vector<4x128xf32>
    %c0_1 = arith.constant 0 : index
    %c0_2 = arith.constant 0 : index
    %1 = vector.load %arg2[%c0_1, %c0_2] : memref<32x4xf32, #tpu.memory_space<vmem>>, vector<32x4xf32>
    %cst = arith.constant dense<0.000000e+00> : vector<32x128xf32>
    %2 = tpu.matmul %1, %0, %cst {dimension_numbers = #tpu.dot_dimension_numbers<[1], [0], [0], [1], [0, 0, 1, 1], [], []>} : vector<32x4xf32>, vector<4x128xf32>, vector<32x128xf32> -> vector<32x128xf32>
    %c0_3 = arith.constant 0 : index
    %c0_4 = arith.constant 0 : index
    %3 = vector.load %arg3[%c0_3, %c0_4] : memref<32x1xf32, #tpu.memory_space<vmem>>, vector<32x1xf32>
    %4 = vector.broadcast %3 : vector<32x1xf32> to vector<32x128xf32>
    %5 = arith.addf %2, %4 : vector<32x128xf32>
    %6 = math.tanh %5 : vector<32x128xf32>
    %c0_5 = arith.constant 0 : index
    %c0_6 = arith.constant 0 : index
    %7 = vector.load %arg4[%c0_5, %c0_6] : memref<32x32xf32, #tpu.memory_space<vmem>>, vector<32x32xf32>
    %cst_7 = arith.constant dense<0.000000e+00> : vector<32x128xf32>
    %8 = tpu.matmul %7, %6, %cst_7 {dimension_numbers = #tpu.dot_dimension_numbers<[1], [0], [0], [1], [0, 0, 1, 1], [], []>} : vector<32x32xf32>, vector<32x128xf32>, vector<32x128xf32> -> vector<32x128xf32>
    %c0_8 = arith.constant 0 : index
    %c0_9 = arith.constant 0 : index
    %9 = vector.load %arg5[%c0_8, %c0_9] : memref<32x1xf32, #tpu.memory_space<vmem>>, vector<32x1xf32>
    %10 = vector.broadcast %9 : vector<32x1xf32> to vector<32x128xf32>
    %11 = arith.addf %8, %10 : vector<32x128xf32>
    %12 = math.tanh %11 : vector<32x128xf32>
    %c0_10 = arith.constant 0 : index
    %c0_11 = arith.constant 0 : index
    %13 = vector.load %arg6[%c0_10, %c0_11] : memref<32x1xf32, #tpu.memory_space<vmem>>, vector<32x1xf32>
    %14 = vector.broadcast %13 : vector<32x1xf32> to vector<32x128xf32>
    %15 = arith.mulf %12, %14 : vector<32x128xf32>
    %cst_12 = arith.constant dense<0.000000e+00> : vector<128xf32>
    %16 = vector.multi_reduction <add>, %15, %cst_12 [0] : vector<32x128xf32> to vector<128xf32>
    %17 = vector.shape_cast %16 : vector<128xf32> to vector<1x128xf32>
    %c0_13 = arith.constant 0 : index
    %18 = memref.load %arg7[%c0_13] : memref<1xf32, #tpu.memory_space<smem>>
    %19 = vector.broadcast %18 : f32 to vector<1x128xf32>
    %20 = arith.addf %17, %19 : vector<1x128xf32>
    %c0_14 = arith.constant 0 : index
    %c0_15 = arith.constant 0 : index
    %21 = vector.load %arg8[%c0_14, %c0_15] : memref<1x128xf32, #tpu.memory_space<vmem>>, vector<1x128xf32>
    tpu.vector_store %arg8[%c0_14, %c0_15], %20 {strides = array<i32>} : memref<1x128xf32, #tpu.memory_space<vmem>>, vector<1x128xf32>,
    return
  }
  func.func @transform_0(%arg0: i32) -> (i32, i32) {
    %c0_i32 = arith.constant 0 : i32
    %c0_i32_0 = arith.constant 0 : i32
    return %c0_i32, %arg0 : i32, i32
  }
  func.func @transform_1(%arg0: i32) -> (i32, i32) {
    %c0_i32 = arith.constant 0 : i32
    %c0_i32_0 = arith.constant 0 : i32
    %c0_i32_1 = arith.constant 0 : i32
    return %c0_i32, %c0_i32_0 : i32, i32
  }
  func.func @transform_2(%arg0: i32) -> (i32, i32) {
    %c0_i32 = arith.constant 0 : i32
    %c0_i32_0 = arith.constant 0 : i32
    %c0_i32_1 = arith.constant 0 : i32
    return %c0_i32, %c0_i32_0 : i32, i32
  }
  func.func @transform_3(%arg0: i32) -> (i32, i32) {
    %c0_i32 = arith.constant 0 : i32
    %c0_i32_0 = arith.constant 0 : i32
    %c0_i32_1 = arith.constant 0 : i32
    return %c0_i32, %c0_i32_0 : i32, i32
  }
  func.func @transform_4(%arg0: i32) -> (i32, i32) {
    %c0_i32 = arith.constant 0 : i32
    %c0_i32_0 = arith.constant 0 : i32
    %c0_i32_1 = arith.constant 0 : i32
    return %c0_i32, %c0_i32_0 : i32, i32
  }
  func.func @transform_5(%arg0: i32) -> (i32, i32) {
    %c0_i32 = arith.constant 0 : i32
    %c0_i32_0 = arith.constant 0 : i32
    %c0_i32_1 = arith.constant 0 : i32
    return %c0_i32, %c0_i32_0 : i32, i32
  }
  func.func @transform_6(%arg0: i32) -> i32 {
    %c0_i32 = arith.constant 0 : i32
    %c0_i32_0 = arith.constant 0 : i32
    return %c0_i32 : i32
  }
  func.func @transform_7(%arg0: i32) -> (i32, i32) {
    %c0_i32 = arith.constant 0 : i32
    %c0_i32_0 = arith.constant 0 : i32
    return %c0_i32, %arg0 : i32, i32
  }
}

</mosaic_0001>

<llo_original>
// kernel: critic_forward.1
$region0: #{critic_forward.1}
  #allocation0 [shape = 'u32[]', space=smem, size = 0x4, offset = 0x4, fixed_abs, tag = 'smem constant byte address 0x4 - core index']
  #allocation1 [shape = 'u32[72,128]{1,0:T(1,128)}', space=vmem, size = 0x9000, scoped, tag = 'internal scratch']
  #allocation2 [shape = 'f32[1]{0:T(128)S(6)}', space=smem, size = 0x200, scoped, tag = 'scoped memory for critic_forward.1']
  %s0 = inlined_call_operand.vmem [shape: f32[4,384], index: 0, kind: input, shape index: {}]
  %s1 = inlined_call_operand.vmem [shape: f32[32,4], index: 1, kind: input, shape index: {}]
  %s2 = inlined_call_operand.vmem [shape: f32[32,1], index: 2, kind: input, shape index: {}]
  %s3 = inlined_call_operand.vmem [shape: f32[32,32], index: 3, kind: input, shape index: {}]
  %s4 = inlined_call_operand.vmem [shape: f32[32,1], index: 4, kind: input, shape index: {}]
  %s5 = inlined_call_operand.vmem [shape: f32[32,1], index: 5, kind: input, shape index: {}]
  %s6 = inlined_call_operand.<no memory space> [shape: f32[1], index: 6, kind: input, shape index: {}]
  %s7 = inlined_call_operand.vmem [shape: f32[1,384], index: 7, kind: output, shape index: {}]
  %s8 = sld [smem:[#allocation0]]
  $region61: #{critic_forward.1} parent=0
    _
  %s10 = ssub.s32 1, %s8
  %s11 = scalar_select 0, %s10, %s8
  %12 = sst [smem:[#allocation2]] %s6
  loop: start=0, step=1, limit=5
  $region2: #{critic_forward.1} parent=0 // loop_pre_header
    _
  $region3: #{critic_forward.1} parent=0 // loop_header
    %s14 = sphi 0, %s18
    %p15 = scmp.ge.s32.totalorder %s14, 5
    %s24 = sphi 0, %s26
    %s27 = sphi 0, %s24
    %s28 = sphi 0, %s27
    %s44 = sphi 0, %s28
    %s48 = sphi 0, %s48
    %s50 = sphi 0, %s48
    %s51 = sphi 0, %s50
    %s65 = sphi 0, %s51
    %s69 = sphi 0, %s69
    %s71 = sphi 0, %s69
    %s72 = sphi 0, %s71
    %s86 = sphi 0, %s72
    %s90 = sphi 0, %s90
    %s92 = sphi 0, %s90
    %s93 = sphi 0, %s92
    %s107 = sphi 0, %s93
    %s111 = sphi 0, %s111
    %s113 = sphi 0, %s111
    %s114 = sphi 0, %s113
    %s128 = sphi 0, %s114
    %s132 = sphi 0, %s132
    %s134 = sphi 0, %s132
    %s135 = sphi 0, %s134
    %s149 = sphi 0, %s135
    %s153 = sphi 0, %s153
    %s155 = sphi 0, %s153
    %s156 = sphi 0, %s155
    %s170 = sphi 0, %s156
    %s176 = sphi 0, %s178
    %s179 = sphi 0, %s176
    %s180 = sphi 0, %s179
    %s196 = sphi 0, %s180
  $region4: #{critic_forward.1} parent=0 // loop_header_branch
    %17 = sbr.rel (%p15) target = $region8
  $region5: #{critic_forward.1} parent=0 // loop_body
    %s19 = ssub.s32 %s14, 1
    %s20 = ssub.s32 %s14, 2
    %s21 = sadd.s32 %s14, 1
    %s22 = ssub.s32 %s14, %s21
    %p23 = scmp.eq.s32.totalorder %s22, 0
    %s25 = sadd.s32 %s24, 1
    %s26 = scalar_select %p23, %s24, %s25
    %p29 = pneg %p23
    %p30 = scmp.eq.s32.totalorder %s14, 2
    %p31 = por %p29, %p30
    %p32 = scmp.ne.s32.totalorder %s24, %s27
    %p33 = scmp.eq.s32.totalorder %s14, 0
    %p34 = por %p32, %p33
    %p35 = scmp.ne.s32.totalorder %s24, %s27
    %p36 = scmp.eq.s32.totalorder %s19, 2
    %p37 = por %p35, %p36
    %p38 = scmp.ne.s32.totalorder %s27, %s28
    %p39 = scmp.eq.s32.totalorder %s19, 0
    %p40 = por %p38, %p39
    %p41 = scmp.ne.s32.totalorder %s27, %s28
    %p42 = scmp.eq.s32.totalorder %s20, 2
    %p43 = por %p41, %p42
    %p45 = scmp.ne.s32.totalorder %s28, %s44
    %p46 = scmp.eq.s32.totalorder %s20, 0
    %p47 = por %p45, %p46
    %s49 = sadd.s32 %s48, 1
    %p52 = scmp.eq.s32.totalorder %s14, 2
    %p53 = scmp.ne.s32.totalorder %s48, %s50
    %p54 = scmp.eq.s32.totalorder %s14, 0
    %p55 = por %p53, %p54
    %p56 = scmp.ne.s32.totalorder %s48, %s50
    %p57 = scmp.eq.s32.totalorder %s19, 2
    %p58 = por %p56, %p57
    %p59 = scmp.ne.s32.totalorder %s50, %s51
    %p60 = scmp.eq.s32.totalorder %s19, 0
    %p61 = por %p59, %p60
    %p62 = scmp.ne.s32.totalorder %s50, %s51
    %p63 = scmp.eq.s32.totalorder %s20, 2
    %p64 = por %p62, %p63
    %p66 = scmp.ne.s32.totalorder %s51, %s65
    %p67 = scmp.eq.s32.totalorder %s20, 0
    %p68 = por %p66, %p67
    %s70 = sadd.s32 %s69, 1
    %p73 = scmp.eq.s32.totalorder %s14, 2
    %p74 = scmp.ne.s32.totalorder %s69, %s71
    %p75 = scmp.eq.s32.totalorder %s14, 0
    %p76 = por %p74, %p75
    %p77 = scmp.ne.s32.totalorder %s69, %s71
    %p78 = scmp.eq.s32.totalorder %s19, 2
    %p79 = por %p77, %p78
    %p80 = scmp.ne.s32.totalorder %s71, %s72
    %p81 = scmp.eq.s32.totalorder %s19, 0
    %p82 = por %p80, %p81
    %p83 = scmp.ne.s32.totalorder %s71, %s72
    %p84 = scmp.eq.s32.totalorder %s20, 2
    %p85 = por %p83, %p84
    %p87 = scmp.ne.s32.totalorder %s72, %s86
    %p88 = scmp.eq.s32.totalorder %s20, 0
    %p89 = por %p87, %p88
    %s91 = sadd.s32 %s90, 1
    %p94 = scmp.eq.s32.totalorder %s14, 2
    %p95 = scmp.ne.s32.totalorder %s90, %s92
    %p96 = scmp.eq.s32.totalorder %s14, 0
    %p97 = por %p95, %p96
    %p98 = scmp.ne.s32.totalorder %s90, %s92
    %p99 = scmp.eq.s32.totalorder %s19, 2
    %p100 = por %p98, %p99
    %p101 = scmp.ne.s32.totalorder %s92, %s93
    %p102 = scmp.eq.s32.totalorder %s19, 0
    %p103 = por %p101, %p102
    %p104 = scmp.ne.s32.totalorder %s92, %s93
    %p105 = scmp.eq.s32.totalorder %s20, 2
    %p106 = por %p104, %p105
    %p108 = scmp.ne.s32.totalorder %s93, %s107
    %p109 = scmp.eq.s32.totalorder %s20, 0
    %p110 = por %p108, %p109
    %s112 = sadd.s32 %s111, 1
    %p115 = scmp.eq.s32.totalorder %s14, 2
    %p116 = scmp.ne.s32.totalorder %s111, %s113
    %p117 = scmp.eq.s32.totalorder %s14, 0
    %p118 = por %p116, %p117
    %p119 = scmp.ne.s32.totalorder %s111, %s113
    %p120 = scmp.eq.s32.totalorder %s19, 2
    %p121 = por %p119, %p120
    %p122 = scmp.ne.s32.totalorder %s113, %s114
    %p123 = scmp.eq.s32.totalorder %s19, 0
    %p124 = por %p122, %p123
    %p125 = scmp.ne.s32.totalorder %s113, %s114
    %p126 = scmp.eq.s32.totalorder %s20, 2
    %p127 = por %p125, %p126
    %p129 = scmp.ne.s32.totalorder %s114, %s128
    %p130 = scmp.eq.s32.totalorder %s20, 0
    %p131 = por %p129, %p130
    %s133 = sadd.s32 %s132, 1
    %p136 = scmp.eq.s32.totalorder %s14, 2
    %p137 = scmp.ne.s32.totalorder %s132, %s134
    %p138 = scmp.eq.s32.totalorder %s14, 0
    %p139 = por %p137, %p138
    %p140 = scmp.ne.s32.totalorder %s132, %s134
    %p141 = scmp.eq.s32.totalorder %s19, 2
    %p142 = por %p140, %p141
    %p143 = scmp.ne.s32.totalorder %s134, %s135
    %p144 = scmp.eq.s32.totalorder %s19, 0
    %p145 = por %p143, %p144
    %p146 = scmp.ne.s32.totalorder %s134, %s135
    %p147 = scmp.eq.s32.totalorder %s20, 2
    %p148 = por %p146, %p147
    %p150 = scmp.ne.s32.totalorder %s135, %s149
    %p151 = scmp.eq.s32.totalorder %s20, 0
    %p152 = por %p150, %p151
    %s154 = sadd.s32 %s153, 1
    %p157 = scmp.eq.s32.totalorder %s14, 2
    %p158 = scmp.ne.s32.totalorder %s153, %s155
    %p159 = scmp.eq.s32.totalorder %s14, 0
    %p160 = por %p158, %p159
    %p161 = scmp.ne.s32.totalorder %s153, %s155
    %p162 = scmp.eq.s32.totalorder %s19, 2
    %p163 = por %p161, %p162
    %p164 = scmp.ne.s32.totalorder %s155, %s156
    %p165 = scmp.eq.s32.totalorder %s19, 0
    %p166 = por %p164, %p165
    %p167 = scmp.ne.s32.totalorder %s155, %s156
    %p168 = scmp.eq.s32.totalorder %s20, 2
    %p169 = por %p167, %p168
    %p171 = scmp.ne.s32.totalorder %s156, %s170
    %p172 = scmp.eq.s32.totalorder %s20, 0
    %p173 = por %p171, %p172
    %s174 = ssub.s32 %s14, %s21
    %p175 = scmp.eq.s32.totalorder %s174, 0
    %s177 = sadd.s32 %s176, 1
    %s178 = scalar_select %p175, %s176, %s177
    %p181 = pneg %p175
    %p182 = scmp.eq.s32.totalorder %s14, 2
    %p183 = por %p181, %p182
    %p184 = scmp.ne.s32.totalorder %s176, %s179
    %p185 = scmp.eq.s32.totalorder %s14, 0
    %p186 = por %p184, %p185
    %p187 = scmp.ne.s32.totalorder %s176, %s179
    %p188 = scmp.eq.s32.totalorder %s19, 2
    %p189 = por %p187, %p188
    %p190 = scmp.ne.s32.totalorder %s179, %s180
    %p191 = scmp.eq.s32.totalorder %s19, 0
    %p192 = por %p190, %p191
    %p193 = scmp.ne.s32.totalorder %s179, %s180
    %p194 = scmp.eq.s32.totalorder %s20, 2
    %p195 = por %p193, %p194
    %p197 = scmp.ne.s32.totalorder %s180, %s196
    %p198 = scmp.eq.s32.totalorder %s20, 0
    %p199 = por %p197, %p198
    %p200 = scmp.le.s32.totalorder 1, %s14
    %p201 = scmp.lt.s32.totalorder %s14, 4
    %p202 = pnand %p200, %p201
    %p203 = pneg %p202
    // Predicated region
    $region9: #{critic_forward.1} parent=5 // pred_check
      _
    $region10: #{critic_forward.1} parent=5 // pred_check_branch
      %205 = sbr.rel (%p202) target = $region12
    $region11: #{critic_forward.1} parent=5 // pred_region
      %s206 = ssub.s32 %s14, 1
      // Predicated region
      $region13: #{critic_forward.1} parent=11 // pred_check
        %p207 = pneg %p61
      $region14: #{critic_forward.1} parent=11 // pred_check_branch
        %209 = sbr.rel (%p207) target = $region16
      $region15: #{critic_forward.1} parent=11 // pred_region
        _
      $region16: #{critic_forward.1} parent=11 // pred_fallthru
        _
      // Predicated region
      $region17: #{critic_forward.1} parent=11 // pred_check
        %p210 = pneg %p82
      $region18: #{critic_forward.1} parent=11 // pred_check_branch
        %212 = sbr.rel (%p210) target = $region20
      $region19: #{critic_forward.1} parent=11 // pred_region
        _
      $region20: #{critic_forward.1} parent=11 // pred_fallthru
        _
      // Predicated region
      $region21: #{critic_forward.1} parent=11 // pred_check
        %p213 = pneg %p103
      $region22: #{critic_forward.1} parent=11 // pred_check_branch
        %215 = sbr.rel (%p213) target = $region24
      $region23: #{critic_forward.1} parent=11 // pred_region
        _
      $region24: #{critic_forward.1} parent=11 // pred_fallthru
        _
      // Predicated region
      $region25: #{critic_forward.1} parent=11 // pred_check
        %p216 = pneg %p124
      $region26: #{critic_forward.1} parent=11 // pred_check_branch
        %218 = sbr.rel (%p216) target = $region28
      $region27: #{critic_forward.1} parent=11 // pred_region
        _
      $region28: #{critic_forward.1} parent=11 // pred_fallthru
        _
      // Predicated region
      $region29: #{critic_forward.1} parent=11 // pred_check
        %p219 = pneg %p145
      $region30: #{critic_forward.1} parent=11 // pred_check_branch
        %221 = sbr.rel (%p219) target = $region32
      $region31: #{critic_forward.1} parent=11 // pred_region
        _
      $region32: #{critic_forward.1} parent=11 // pred_fallthru
        _
      // Predicated region
      $region33: #{critic_forward.1} parent=11 // pred_check
        %p222 = pneg %p166
      $region34: #{critic_forward.1} parent=11 // pred_check_branch
        %224 = sbr.rel (%p222) target = $region36
      $region35: #{critic_forward.1} parent=11 // pred_region
        _
      $region36: #{critic_forward.1} parent=11 // pred_fallthru
        _
    $region12: #{critic_forward.1} parent=5 // pred_fallthru
      _
    %p225 = scmp.lt.s32.totalorder %s14, 3
    // Predicated region
    $region37: #{critic_forward.1} parent=5 // pred_check
      %p226 = pneg %p225
    $region38: #{critic_forward.1} parent=5 // pred_check_branch
      %228 = sbr.rel (%p226) target = $region40
    $region39: #{critic_forward.1} parent=5 // pred_region
      // Predicated region
      $region41: #{critic_forward.1} parent=39 // pred_check
        %p229 = pneg %p34
      $region42: #{critic_forward.1} parent=39 // pred_check_branch
        %231 = sbr.rel (%p229) target = $region44
      $region43: #{critic_forward.1} parent=39 // pred_region
        %p232 = scmp.lt.s32.totalorder %s14, 2
        %s233 = scalar_select %p232, %s14, 2
        %s234 = smul.addr %s233, 4
        %s235 = scalar_lea.vmem %s0, %s234
      $region44: #{critic_forward.1} parent=39 // pred_fallthru
        _
    $region40: #{critic_forward.1} parent=5 // pred_fallthru
      _
    %p236 = scmp.le.s32.totalorder 1, %s14
    %p237 = scmp.lt.s32.totalorder %s14, 4
    %p238 = pnand %p236, %p237
    %p239 = pneg %p238
    // Predicated region
    $region45: #{critic_forward.1} parent=5 // pred_check
      _
    $region46: #{critic_forward.1} parent=5 // pred_check_branch
      %241 = sbr.rel (%p238) target = $region48
    $region47: #{critic_forward.1} parent=5 // pred_region
      %s242 = ssub.s32 %s14, 1
      %p243 = scmp.lt.s32.totalorder %s19, 2
      %s244 = scalar_select %p243, %s19, 2
      %s245 = smul.addr %s244, 4
      %s246 = scalar_lea.vmem %s0, %s245
      %p247 = pneg %p40
      %p248 = pneg %p37
      %p249 = pneg %p61
      %p250 = pneg %p58
      %p251 = pneg %p82
      %p252 = pneg %p79
      %p253 = pneg %p103
      %p254 = pneg %p100
      %p255 = pneg %p124
      %p256 = pneg %p121
      %p257 = pneg %p145
      %p258 = pneg %p142
      %p259 = pneg %p166
      %p260 = pneg %p163
      %p261 = pneg %p192
      %p262 = pneg %p189
      %p263 = scmp.lt.s32.totalorder %s19, 2
      %s264 = scalar_select %p263, %s19, 2
      %s265 = scalar_lea.vmem %s7, %s264
      %p266 = scmp.lt.s32.totalorder %s19, 2
      %s267 = scalar_select %p266, %s19, 2
      %s268 = smul.addr %s267, 4
      %s269 = scalar_lea.vmem %s0, %s268
      %p270 = scmp.lt.s32.totalorder %s19, 2
      %s271 = scalar_select %p270, %s19, 2
      %s272 = scalar_lea.vmem %s7, %s271
      %v273 = vld [vmem:[%s269] sm:$0xf]
      %v274 = vld [vmem:[%s1] sm:$0xff]
      %v275 = vld [vmem:[%s1 + $0x8] sm:$0xff]
      %v276 = vld [vmem:[%s1 + $0x10] sm:$0xff]
      %v277 = vld [vmem:[%s1 + $0x18] sm:$0xff]
      %v278 = vld [vmem:[%s2] sm:$0xff]
      %v279 = vld [vmem:[%s2 + $0x8] sm:$0xff]
      %v280 = vld [vmem:[%s2 + $0x10] sm:$0xff]
      %v281 = vld [vmem:[%s2 + $0x18] sm:$0xff]
      %283 = vset.pattern.permute.xlu0 0
      %284 = vperm.xlu0 %283, %v278
      %v285 = vpop.permute.xlu0 %284
      %288 = vset.pattern.permute.xlu0 0
      %289 = vperm.xlu0 %288, %v279
      %v290 = vpop.permute.xlu0 %289
      %293 = vset.pattern.permute.xlu0 0
      %294 = vperm.xlu0 %293, %v280
      %v295 = vpop.permute.xlu0 %294
      %298 = vset.pattern.permute.xlu0 0
      %299 = vperm.xlu0 %298, %v281
      %v300 = vpop.permute.xlu0 %299
      %vm302 = vcmask 31744
      %v304 = vsel %vm302, %v274, 0
      %v307 = vsel %vm302, %v275, 0
      %v310 = vsel %vm302, %v276, 0
      %v313 = vsel %vm302, %v277, 0
      %vm315 = vcmask 1043456
      %v317 = vsel %vm315, %v273, 0
      %319 = vmatpush.msra.mxu0 0.0
      %320 = vmatpush.msra.mxu0 0.0
      %321 = vmatpush.msra.mxu0 0.0
      %322 = vmatpush.msra.mxu0 0.0
      %323 = vmatpush.msra.mxu0 0.0
      %324 = vmatpush.msra.mxu0 0.0
      %325 = vmatpush.msra.mxu0 0.0
      %326 = vmatpush.msra.mxu0 0.0
      %327 = vmatpush.msra.mxu0 0.0
      %328 = vmatpush.msra.mxu0 0.0
      %329 = vmatpush.msra.mxu0 0.0
      %330 = vmatpush.msra.mxu0 0.0
      %331 = vmatpush.msra.mxu0 0.0
      %332 = vmatpush.msra.mxu0 0.0
      %333 = vmatpush.msra.mxu0 0.0
      %334 = vmatpush.msra.mxu0 %v317
      %335 = vmatmul.f32.gmra.mxu0 %v304
      %v336 = vpop.f32.mrf.mxu0
      %v337 = vadd.f32 %v285, %v336
      %338 = vmatmul.f32.gmra.mxu0 %v307
      %v339 = vpop.f32.mrf.mxu0
      %v340 = vadd.f32 %v290, %v339
      %341 = vmatmul.f32.gmra.mxu0 %v310
      %v342 = vpop.f32.mrf.mxu0
      %v343 = vadd.f32 %v295, %v342
      %344 = vmatmul.f32.gmra.mxu0 %v313
      %v345 = vpop.f32.mrf.mxu0
      %v346 = vadd.f32 %v300, %v345
      %347 = vdwg.mxu0
      %v348 = vtanh.pop %v337
      %v349 = vtanh.pop %v340
      %v350 = vtanh.pop %v343
      %v351 = vtanh.pop %v346
      %v352 = vld [vmem:[%s3] sm:$0xff]
      %v353 = vld [vmem:[%s3 + $0x8] sm:$0xff]
      %v354 = vld [vmem:[%s3 + $0x10] sm:$0xff]
      %v355 = vld [vmem:[%s3 + $0x18] sm:$0xff]
      %v356 = vld [vmem:[%s4] sm:$0xff]
      %v357 = vld [vmem:[%s4 + $0x8] sm:$0xff]
      %v358 = vld [vmem:[%s4 + $0x10] sm:$0xff]
      %v359 = vld [vmem:[%s4 + $0x18] sm:$0xff]
      %361 = vset.pattern.permute.xlu0 0
      %362 = vperm.xlu0 %361, %v356
      %v363 = vpop.permute.xlu0 %362
      %366 = vset.pattern.permute.xlu0 0
      %367 = vperm.xlu0 %366, %v357
      %v368 = vpop.permute.xlu0 %367
      %371 = vset.pattern.permute.xlu0 0
      %372 = vperm.xlu0 %371, %v358
      %v373 = vpop.permute.xlu0 %372
      %376 = vset.pattern.permute.xlu0 0
      %377 = vperm.xlu0 %376, %v359
      %v378 = vpop.permute.xlu0 %377
      %vm380 = vcmask 261120
      %v382 = vsel %vm380, %v352, 0
      %v385 = vsel %vm380, %v353, 0
      %v388 = vsel %vm380, %v354, 0
      %v391 = vsel %vm380, %v355, 0
      %393 = vmatpush.msra.mxu0 0.0
      %394 = vmatpush.msra.mxu0 0.0
      %395 = vmatpush.msra.mxu0 0.0
      %396 = vmatpush.msra.mxu0 0.0
      %397 = vmatpush.msra.mxu0 0.0
      %398 = vmatpush.msra.mxu0 0.0
      %399 = vmatpush.msra.mxu0 0.0
      %400 = vmatpush.msra.mxu0 0.0
      %401 = vmatpush.msra.mxu0 0.0
      %402 = vmatpush.msra.mxu0 0.0
      %403 = vmatpush.msra.mxu0 0.0
      %404 = vmatpush.msra.mxu0 0.0
      %405 = vmatpush.msra.mxu0 %v351
      %406 = vmatpush.msra.mxu0 %v350
      %407 = vmatpush.msra.mxu0 %v349
      %408 = vmatpush.msra.mxu0 %v348
      %409 = vmatmul.f32.gmra.mxu0 %v382
      %v410 = vpop.f32.mrf.mxu0
      %v411 = vadd.f32 %v363, %v410
      %412 = vmatmul.f32.gmra.mxu0 %v385
      %v413 = vpop.f32.mrf.mxu0
      %v414 = vadd.f32 %v368, %v413
      %415 = vmatmul.f32.gmra.mxu0 %v388
      %v416 = vpop.f32.mrf.mxu0
      %v417 = vadd.f32 %v373, %v416
      %418 = vmatmul.f32.gmra.mxu0 %v391
      %v419 = vpop.f32.mrf.mxu0
      %v420 = vadd.f32 %v378, %v419
      %421 = vdwg.mxu0
      %v422 = vtanh.pop %v411
      %v423 = vtanh.pop %v414
      %v424 = vtanh.pop %v417
      %v425 = vtanh.pop %v420
      %v426 = vld [vmem:[%s5] sm:$0xff]
      %v427 = vld [vmem:[%s5 + $0x8] sm:$0xff]
      %v428 = vld [vmem:[%s5 + $0x10] sm:$0xff]
      %v429 = vld [vmem:[%s5 + $0x18] sm:$0xff]
      %431 = vset.pattern.permute.xlu0 0
      %432 = vperm.xlu0 %431, %v426
      %v433 = vpop.permute.xlu0 %432
      %436 = vset.pattern.permute.xlu0 0
      %437 = vperm.xlu0 %436, %v427
      %v438 = vpop.permute.xlu0 %437
      %441 = vset.pattern.permute.xlu0 0
      %442 = vperm.xlu0 %441, %v428
      %v443 = vpop.permute.xlu0 %442
      %446 = vset.pattern.permute.xlu0 0
      %447 = vperm.xlu0 %446, %v429
      %v448 = vpop.permute.xlu0 %447
      %v450 = vmul.f32 %v422, %v433
      %v451 = vmul.f32 %v423, %v438
      %v452 = vmul.f32 %v424, %v443
      %v453 = vmul.f32 %v425, %v448
      %v454 = vadd.f32 %v450, %v451
      %v455 = vadd.f32 %v454, %v452
      %v456 = vadd.f32 %v455, %v453
      %v457 = vrot.slane %v456, 4
      %v458 = vadd.f32 %v456, %v457
      %v459 = vrot.slane %v458, 2
      %v460 = vadd.f32 %v458, %v459
      %v461 = vrot.slane %v460, 1
      %v462 = vadd.f32 %v460, %v461
      %s463 = sld [smem:[#allocation2]]
      %v464 = vstv %s463
      %v465 = vadd.f32 %v462, %v464
      %466 = vst [vmem:[%s272] sm:$0x1] %v465
      %p467 = scmp.lt.s32.totalorder %s19, 2
      %s468 = scalar_select %p467, %s19, 2
      %s469 = scalar_lea.vmem %s7, %s468
      // Predicated region
      $region49: #{critic_forward.1} parent=47 // pred_check
        %p470 = pneg %p189
      $region50: #{critic_forward.1} parent=47 // pred_check_branch
        %472 = sbr.rel (%p470) target = $region52
      $region51: #{critic_forward.1} parent=47 // pred_region
        _
      $region52: #{critic_forward.1} parent=47 // pred_fallthru
        _
    $region48: #{critic_forward.1} parent=5 // pred_fallthru
      _
    %p473 = scmp.le.s32.totalorder 2, %s14
    // Predicated region
    $region53: #{critic_forward.1} parent=5 // pred_check
      %p474 = pneg %p473
    $region54: #{critic_forward.1} parent=5 // pred_check_branch
      %476 = sbr.rel (%p474) target = $region56
    $region55: #{critic_forward.1} parent=5 // pred_region
      %s477 = ssub.s32 %s14, 2
      // Predicated region
      $region57: #{critic_forward.1} parent=55 // pred_check
        %p478 = pneg %p195
      $region58: #{critic_forward.1} parent=55 // pred_check_branch
        %480 = sbr.rel (%p478) target = $region60
      $region59: #{critic_forward.1} parent=55 // pred_region
        %p481 = scmp.lt.s32.totalorder %s20, 2
        %s482 = scalar_select %p481, %s20, 2
        %s483 = scalar_lea.vmem %s7, %s482
      $region60: #{critic_forward.1} parent=55 // pred_fallthru
        _
    $region56: #{critic_forward.1} parent=5 // pred_fallthru
      _
  $region6: #{critic_forward.1} parent=0 // loop_footer
    %s18 = sadd.s32 1, %s14
  $region7: #{critic_forward.1} parent=0 // loop_footer_branch
    %13 = sbr.rel target = $region3
  $region8: #{critic_forward.1} parent=0 // loop_exit
    _

</llo_original>
